<compile_context>
chip_gen: v5e
topology: v5e:2x2
jax: 0.10.0
libtpu: 0.0.40
codegen_flags: <defaults>
</compile_context>

<pallas_src>
import functools

import jax
import jax.numpy as jnp
from jax.experimental import pallas as pl
from jax.experimental.pallas import tpu as pltpu


# ---------------------------------------------------------------- kernels ----
def _max_sublane_kernel(x_ref, o_ref):
    """x_ref: (TILE_O, TILE_R, TILE_N); reduce the (sublane) R axis."""
    part = jnp.max(x_ref[...], axis=1)                   # (TILE_O, TILE_N)

    @pl.when(pl.program_id(2) == 0)
    def _():
        o_ref[...] = part

    @pl.when(pl.program_id(2) > 0)
    def _():
        o_ref[...] = jnp.maximum(o_ref[...], part)


def _max_lane_kernel(x_ref, o_ref):
    """x_ref: (TILE_O, TILE_R); reduce the (lane) R axis (last-axis case)."""
    part = jnp.max(x_ref[...], axis=1, keepdims=True)    # (TILE_O, 1)

    @pl.when(pl.program_id(1) == 0)
    def _():
        o_ref[...] = part

    @pl.when(pl.program_id(1) > 0)
    def _():
        o_ref[...] = jnp.maximum(o_ref[...], part)


# ---------------------------------------------------------------- helpers ----
@functools.lru_cache(maxsize=None)
def _hw_config():
    """(block_budget_bytes, vmem_limit_bytes, want_two_parallel_tiles)."""
    kind = ""
    try:
        kind = jax.devices()[0].device_kind.lower()
    except Exception:  # defensive: never fail config lookup
        pass
    if "v7" in kind:
        cfg = (8 << 20, 44 << 20, True)    # 64 MiB physical VMEM, 2 TCs
    elif "v6" in kind:
        cfg = (8 << 20, 64 << 20, False)   # 128 MiB physical VMEM
    else:                                   # v5e / unknown: conservative
        cfg = (4 << 20, 32 << 20, False)
    try:  # clamp against the actual part when the query is available
        cap = int(pltpu.get_tpu_info().vmem_capacity_bytes)
        cfg = (min(cfg[0], max(1 << 20, cap // 8)),
               min(cfg[1], int(cap * 0.7)),
               cfg[2])
    except Exception:
        pass
    return cfg


def _choose_tile(size, preferred, multiple):
    """Pick a tile for an axis of length `size`.

    Returns (tile, padded_size): `tile` divides `padded_size` and is either a
    multiple of `multiple` or the full (un-padded) axis.  Only pads when the
    axis is larger than `preferred` and has no usable divisor, so the
    full-dimension fallback can never blow the VMEM budget.
    """
    preferred = max(int(preferred), int(multiple))
    if size <= preferred:
        return size, size
    t = (preferred // multiple) * multiple
    while t >= multiple:
        if size % t == 0:
            return t, size
        t -= multiple
    t = (preferred // multiple) * multiple
    padded = ((size + t - 1) // t) * t
    return t, padded


def _fill_value(dtype):
    """Identity element for max() in `dtype` (static Python scalar)."""
    dtype = jnp.dtype(dtype)
    if jnp.issubdtype(dtype, jnp.integer):
        return int(jnp.iinfo(dtype).min)
    if dtype == jnp.dtype(jnp.bool_):
        return False
    return float("-inf")


# ----------------------------------------------------------------- driver ----
def _max_middle_axis(x3, budget_elems, sub_mult, fill, vmem_limit, want_two,
                     itemsize):
    """Reduce axis 1 of (outer, R, inner); returns (outer, inner)."""
    outer, R, inner = x3.shape

    # Lane axis: >=128 lanes when available, else the full (small) axis.
    if inner >= 128:
        tile_n, inner_p = _choose_tile(inner, 512, 128)
    else:
        tile_n, inner_p = inner, inner

    # Reduction axis (sublanes): take the budget assuming a minimal outer tile
    # so small-R shapes leave room for tile_o to grow afterwards.
    min_o = min(outer, sub_mult)
    r_pref = max(sub_mult,
                 (budget_elems // max(1, min_o * tile_n)) // sub_mult * sub_mult)
    tile_r, R_p = _choose_tile(R, r_pref, sub_mult)

    # Outer axis: fill the remaining block budget in sublane-pack multiples.
    o_pref = max(sub_mult,
                 (budget_elems // max(1, tile_r * tile_n)) // sub_mult * sub_mult)
    tile_o, outer_p = _choose_tile(outer, o_pref, sub_mult)

    # v7x: make sure both TensorCores get parallel work when possible.
    if want_two and (outer_p // tile_o) * (inner_p // tile_n) < 2:
        if tile_n % 256 == 0:
            tile_n //= 2
        elif tile_o % (2 * sub_mult) == 0:
            tile_o //= 2

    if (outer_p, R_p, inner_p) != (outer, R, inner):
        x3 = jnp.pad(x3, ((0, outer_p - outer), (0, R_p - R),
                          (0, inner_p - inner)), constant_values=fill)

    grid = (outer_p // tile_o, inner_p // tile_n, R_p // tile_r)

    out = pl.pallas_call(
        _max_sublane_kernel,
        out_shape=jax.ShapeDtypeStruct((outer_p, inner_p), x3.dtype),
        grid_spec=pltpu.PrefetchScalarGridSpec(
            num_scalar_prefetch=0,
            grid=grid,
            in_specs=[pl.BlockSpec((tile_o, tile_r, tile_n),
                                   lambda i, j, k: (i, k, j))],
            out_specs=pl.BlockSpec((tile_o, tile_n), lambda i, j, k: (i, j)),
        ),
        compiler_params=pltpu.CompilerParams(
            dimension_semantics=("parallel", "parallel", "arbitrary"),
            vmem_limit_bytes=vmem_limit,
        ),
        cost_estimate=pl.CostEstimate(
            flops=outer_p * R_p * inner_p,
            transcendentals=0,
            bytes_accessed=(outer_p * R_p * inner_p + outer_p * inner_p)
            * itemsize,
        ),
    )(x3)

    if (outer_p, inner_p) != (outer, inner):
        out = out[:outer, :inner]
    return out


def _max_last_axis(x2, budget_elems, sub_mult, fill, vmem_limit, want_two,
                   itemsize):
    """Reduce axis 1 of (outer, R) over lanes; returns (outer, 1)."""
    outer, R = x2.shape

    # R is the lane axis here; outer provides sublanes.
    min_o = min(outer, sub_mult)
    r_pref = max(128, (budget_elems // max(1, min_o)) // 128 * 128)
    tile_r, R_p = _choose_tile(R, r_pref, 128)

    o_pref = max(sub_mult,
                 (budget_elems // max(1, tile_r)) // sub_mult * sub_mult)
    tile_o, outer_p = _choose_tile(outer, o_pref, sub_mult)

    # v7x: keep both TensorCores busy on the (only) parallel axis if possible.
    if want_two and outer_p // tile_o < 2 and tile_o % (2 * sub_mult) == 0:
        tile_o //= 2

    if (outer_p, R_p) != (outer, R):
        x2 = jnp.pad(x2, ((0, outer_p - outer), (0, R_p - R)),
                     constant_values=fill)

    grid = (outer_p // tile_o, R_p // tile_r)

    out = pl.pallas_call(
        _max_lane_kernel,
        out_shape=jax.ShapeDtypeStruct((outer_p, 1), x2.dtype),
        grid_spec=pltpu.PrefetchScalarGridSpec(
            num_scalar_prefetch=0,
            grid=grid,
            in_specs=[pl.BlockSpec((tile_o, tile_r), lambda i, k: (i, k))],
            out_specs=pl.BlockSpec((tile_o, 1), lambda i, k: (i, 0)),
        ),
        compiler_params=pltpu.CompilerParams(
            dimension_semantics=("parallel", "arbitrary"),
            vmem_limit_bytes=vmem_limit,
        ),
        cost_estimate=pl.CostEstimate(
            flops=outer_p * R_p,
            transcendentals=0,
            bytes_accessed=(outer_p * R_p + outer_p) * itemsize,
        ),
    )(x2)

    if outer_p != outer:
        out = out[:outer]
    return out


@functools.partial(jax.jit, static_argnames=("dim", "force_pallas"))
def custom_max_pool(x, dim: int, force_pallas: bool = False):
    """Equivalent of torch.max(x, dim=dim, keepdim=False)[0]."""
    dim = dim % x.ndim
    shape = x.shape
    out_shape = shape[:dim] + shape[dim + 1:]

    itemsize = jnp.dtype(x.dtype).itemsize
    nbytes = x.size * itemsize

    # Degenerate / tiny tensors: pallas_call launch overhead dominates there.
    if x.size == 0 or (not force_pallas and nbytes < (1 << 20)):
        return jnp.max(x, axis=dim)

    outer = 1
    for s in shape[:dim]:
        outer *= s
    R = shape[dim]
    inner = 1
    for s in shape[dim + 1:]:
        inner *= s

    block_budget, vmem_limit, want_two = _hw_config()
    budget_elems = max(1, block_budget // itemsize)
    sub_mult = 8 * max(1, 4 // itemsize)     # f32: 8, bf16: 16, int8/fp8: 32
    fill = _fill_value(x.dtype)

    if inner == 1:
        out = _max_last_axis(x.reshape(outer, R), budget_elems, sub_mult,
                             fill, vmem_limit, want_two, itemsize)
        return out.reshape(out_shape)

    out = _max_middle_axis(x.reshape(outer, R, inner), budget_elems, sub_mult,
                           fill, vmem_limit, want_two, itemsize)
    return out.reshape(out_shape)


if __name__ == "__main__":
    key = jax.random.PRNGKey(0)
    # Small NCHW-like input consistent with the module's forward.
    x = jax.random.normal(key, (2, 4, 16, 16), dtype=jnp.float32)

    # Exercise every kernel path (dim=0 free reshape, dense-lane middle dim,
    # lane-sparse middle dim, last-axis lane reduction), forcing the Pallas
    # path even though the demo tensor is below the small-tensor threshold.
    for d in range(x.ndim):
        y = jax.block_until_ready(custom_max_pool(x, d, force_pallas=True))
        y_ref = jnp.max(x, axis=d)
        assert y.shape == y_ref.shape, (d, y.shape, y_ref.shape)
        assert jnp.array_equal(y, y_ref), f"mismatch vs reference (dim={d})"

    # bf16 exercises the dtype-aware sublane packing.
    xb = jax.random.normal(jax.random.PRNGKey(1), (2, 8, 8, 32),
                           dtype=jnp.bfloat16)
    yb = jax.block_until_ready(custom_max_pool(xb, 1, force_pallas=True))
    assert jnp.array_equal(yb, jnp.max(xb, axis=1)), "mismatch (bf16, dim=1)"

    # Default call (small-tensor fast path) still matches the reference.
    y_small = jax.block_until_ready(custom_max_pool(x, 1))
    assert jnp.array_equal(y_small, jnp.max(x, axis=1)), "fast-path mismatch"

    print("KERNEL_OK")
</pallas_src>

<mosaic_0001>
module attributes {stable_mosaic.version = 11 : i64} {
  func.func @_max_sublane_kernel(%arg0: i32, %arg1: i32, %arg2: i32, %arg3: memref<1x2x512xf32, #tpu.memory_space<vmem>>, %arg4: memref<1x512xf32, #tpu.memory_space<vmem>>) attributes {dimension_semantics = [#tpu.dimension_semantics<parallel>, #tpu.dimension_semantics<parallel>, #tpu.dimension_semantics<arbitrary>], iteration_bounds = array<i64: 1, 2, 1>, scalar_prefetch = 0 : i64, scratch_operands = 0 : i64, tpu.core_type = #tpu.core_type<tc>, window_params = [{transform_indices = @transform_0, window_bounds = array<i64: 1, 2, 512>}, {transform_indices = @transform_1, window_bounds = array<i64: 1, 512>}]} {
    %c0 = arith.constant 0 : index
    %c0_0 = arith.constant 0 : index
    %c0_1 = arith.constant 0 : index
    %0 = vector.load %arg3[%c0, %c0_0, %c0_1] : memref<1x2x512xf32, #tpu.memory_space<vmem>>, vector<1x2x512xf32>
    %cst = arith.constant dense<0xFF800000> : vector<1x512xf32>
    %1 = vector.multi_reduction <maximumf>, %0, %cst [1] : vector<1x2x512xf32> to vector<1x512xf32>
    %c0_i32 = arith.constant 0 : i32
    %2 = arith.cmpi eq, %arg2, %c0_i32 : i32
    %3 = arith.extui %2 : i1 to i32
    %c0_i32_2 = arith.constant 0 : i32
    %4 = arith.cmpi ne, %3, %c0_i32_2 : i32
    scf.if %4 {
      %c0_5 = arith.constant 0 : index
      %c0_6 = arith.constant 0 : index
      %8 = vector.load %arg4[%c0_5, %c0_6] : memref<1x512xf32, #tpu.memory_space<vmem>>, vector<1x512xf32>
      tpu.vector_store %arg4[%c0_5, %c0_6], %1 {strides = array<i32>} : memref<1x512xf32, #tpu.memory_space<vmem>>, vector<1x512xf32>,
    } else {
    }
    %c0_i32_3 = arith.constant 0 : i32
    %5 = arith.cmpi sgt, %arg2, %c0_i32_3 : i32
    %6 = arith.extui %5 : i1 to i32
    %c0_i32_4 = arith.constant 0 : i32
    %7 = arith.cmpi ne, %6, %c0_i32_4 : i32
    scf.if %7 {
      %c0_5 = arith.constant 0 : index
      %c0_6 = arith.constant 0 : index
      %8 = vector.load %arg4[%c0_5, %c0_6] : memref<1x512xf32, #tpu.memory_space<vmem>>, vector<1x512xf32>
      %9 = arith.maximumf %8, %1 : vector<1x512xf32>
      %c0_7 = arith.constant 0 : index
      %c0_8 = arith.constant 0 : index
      %10 = vector.load %arg4[%c0_7, %c0_8] : memref<1x512xf32, #tpu.memory_space<vmem>>, vector<1x512xf32>
      tpu.vector_store %arg4[%c0_7, %c0_8], %9 {strides = array<i32>} : memref<1x512xf32, #tpu.memory_space<vmem>>, vector<1x512xf32>,
    } else {
    }
    return
  }
  func.func @transform_0(%arg0: i32, %arg1: i32, %arg2: i32) -> (i32, i32, i32) {
    %c0_i32 = arith.constant 0 : i32
    return %arg0, %arg2, %arg1 : i32, i32, i32
  }
  func.func @transform_1(%arg0: i32, %arg1: i32, %arg2: i32) -> (i32, i32) {
    %c0_i32 = arith.constant 0 : i32
    return %arg0, %arg1 : i32, i32
  }
}

</mosaic_0001>

<llo_original>
// kernel: custom_max_pool.1
$region0: #{custom_max_pool.1}
  #allocation0 [shape = 'u32[]', space=smem, size = 0x4, offset = 0x4, fixed_abs, tag = 'smem constant byte address 0x4 - core index']
  #allocation1 [shape = 'u32[72,128]{1,0:T(1,128)}', space=vmem, size = 0x9000, scoped, tag = 'internal scratch']
  %s0 = inlined_call_operand.vmem [shape: f32[1,2,1024], index: 0, kind: input, shape index: {}]
  %s1 = inlined_call_operand.vmem [shape: f32[1,1024], index: 1, kind: output, shape index: {}]
  %s2 = sld [smem:[#allocation0]]
  $region45: #{custom_max_pool.1} parent=0
    _
  %s4 = ssub.s32 1, %s2
  %s5 = scalar_select 0, %s4, %s2
  loop: start=0, step=1, limit=4
  $region2: #{custom_max_pool.1} parent=0 // loop_pre_header
    _
  $region3: #{custom_max_pool.1} parent=0 // loop_header
    %s7 = sphi 0, %s11
    %p8 = scmp.ge.s32.totalorder %s7, 4
    %s14 = sphi 0, %s33
    %s15 = sphi 0, %s29
    %s16 = sphi 0, %s25
    %s17 = sphi 0, %s14
    %s18 = sphi 0, %s15
    %s19 = sphi 0, %s16
    %s20 = sphi 0, %s17
    %s21 = sphi 0, %s18
    %s22 = sphi 0, %s19
    %s40 = sphi 0, %s42
    %s43 = sphi 0, %s40
    %s44 = sphi 0, %s43
    %s60 = sphi 0, %s44
    %s68 = sphi 0, %s70
    %s71 = sphi 0, %s68
    %s72 = sphi 0, %s71
    %s88 = sphi 0, %s72
  $region4: #{custom_max_pool.1} parent=0 // loop_header_branch
    %10 = sbr.rel (%p8) target = $region8
  $region5: #{custom_max_pool.1} parent=0 // loop_body
    %s12 = ssub.s32 %s7, 1
    %s13 = ssub.s32 %s7, 2
    %s23 = sadd.s32 1, %s16
    %p24 = scmp.ge.s32.totalorder %s23, 1
    %s25 = scalar_select %p24, 0, %s23
    %s26 = sadd.s32 1, %s15
    %s27 = scalar_select %p24, %s26, %s15
    %p28 = scmp.ge.s32.totalorder %s27, 2
    %s29 = scalar_select %p28, 0, %s27
    %s30 = sadd.s32 1, %s14
    %s31 = scalar_select %p28, %s30, %s14
    %p32 = scmp.ge.s32.totalorder %s31, 1
    %s33 = scalar_select %p32, 0, %s31
    %s34 = ssub.s32 %s14, %s33
    %s35 = ssub.s32 %s16, %s25
    %s36 = sor.u32 %s34, %s35
    %s37 = ssub.s32 %s15, %s29
    %s38 = sor.u32 %s36, %s37
    %p39 = scmp.eq.s32.totalorder %s38, 0
    %s41 = sadd.s32 %s40, 1
    %s42 = scalar_select %p39, %s40, %s41
    %p45 = pneg %p39
    %p46 = scmp.eq.s32.totalorder %s7, 1
    %p47 = por %p45, %p46
    %p48 = scmp.ne.s32.totalorder %s40, %s43
    %p49 = scmp.eq.s32.totalorder %s7, 0
    %p50 = por %p48, %p49
    %p51 = scmp.ne.s32.totalorder %s40, %s43
    %p52 = scmp.eq.s32.totalorder %s12, 1
    %p53 = por %p51, %p52
    %p54 = scmp.ne.s32.totalorder %s43, %s44
    %p55 = scmp.eq.s32.totalorder %s12, 0
    %p56 = por %p54, %p55
    %p57 = scmp.ne.s32.totalorder %s43, %s44
    %p58 = scmp.eq.s32.totalorder %s13, 1
    %p59 = por %p57, %p58
    %p61 = scmp.ne.s32.totalorder %s44, %s60
    %p62 = scmp.eq.s32.totalorder %s13, 0
    %p63 = por %p61, %p62
    %s64 = ssub.s32 %s14, %s33
    %s65 = ssub.s32 %s15, %s29
    %s66 = sor.u32 %s64, %s65
    %p67 = scmp.eq.s32.totalorder %s66, 0
    %s69 = sadd.s32 %s68, 1
    %s70 = scalar_select %p67, %s68, %s69
    %p73 = pneg %p67
    %p74 = scmp.eq.s32.totalorder %s7, 1
    %p75 = por %p73, %p74
    %p76 = scmp.ne.s32.totalorder %s68, %s71
    %p77 = scmp.eq.s32.totalorder %s7, 0
    %p78 = por %p76, %p77
    %p79 = scmp.ne.s32.totalorder %s68, %s71
    %p80 = scmp.eq.s32.totalorder %s12, 1
    %p81 = por %p79, %p80
    %p82 = scmp.ne.s32.totalorder %s71, %s72
    %p83 = scmp.eq.s32.totalorder %s12, 0
    %p84 = por %p82, %p83
    %p85 = scmp.ne.s32.totalorder %s71, %s72
    %p86 = scmp.eq.s32.totalorder %s13, 1
    %p87 = por %p85, %p86
    %p89 = scmp.ne.s32.totalorder %s72, %s88
    %p90 = scmp.eq.s32.totalorder %s13, 0
    %p91 = por %p89, %p90
    %p92 = scmp.le.s32.totalorder 1, %s7
    %p93 = scmp.lt.s32.totalorder %s7, 3
    %p94 = pnand %p92, %p93
    %p95 = pneg %p94
    // Predicated region
    $region9: #{custom_max_pool.1} parent=5 // pred_check
      _
    $region10: #{custom_max_pool.1} parent=5 // pred_check_branch
      %97 = sbr.rel (%p94) target = $region12
    $region11: #{custom_max_pool.1} parent=5 // pred_region
      %s98 = ssub.s32 %s7, 1
    $region12: #{custom_max_pool.1} parent=5 // pred_fallthru
      _
    %p99 = scmp.lt.s32.totalorder %s7, 2
    // Predicated region
    $region13: #{custom_max_pool.1} parent=5 // pred_check
      %p100 = pneg %p99
    $region14: #{custom_max_pool.1} parent=5 // pred_check_branch
      %102 = sbr.rel (%p100) target = $region16
    $region15: #{custom_max_pool.1} parent=5 // pred_region
      // Predicated region
      $region17: #{custom_max_pool.1} parent=15 // pred_check
        %p103 = pneg %p50
      $region18: #{custom_max_pool.1} parent=15 // pred_check_branch
        %105 = sbr.rel (%p103) target = $region20
      $region19: #{custom_max_pool.1} parent=15 // pred_region
        %s106 = smul.u32 4, %s15
        %p107 = scmp.lt.s32.totalorder %s14, 0
        %s108 = scalar_select %p107, %s14, 0
        %p109 = scmp.lt.s32.totalorder %s16, 0
        %s110 = scalar_select %p109, %s16, 0
        %p111 = scmp.lt.s32.totalorder %s106, 7
        %s112 = scalar_select %p111, %s106, 7
        %s113 = smul.addr %s110, 8
        %s114 = sadd.s32 %s112, %s113
        %s115 = smul.addr %s108, 8
        %s116 = sadd.s32 %s114, %s115
        %s117 = smul.addr %s116, 2
        %s118 = scalar_lea.vmem %s0, %s117
        %s119 = smul.u32 4, %s15
      $region20: #{custom_max_pool.1} parent=15 // pred_fallthru
        _
    $region16: #{custom_max_pool.1} parent=5 // pred_fallthru
      _
    %p120 = scmp.le.s32.totalorder 1, %s7
    %p121 = scmp.lt.s32.totalorder %s7, 3
    %p122 = pnand %p120, %p121
    %p123 = pneg %p122
    // Predicated region
    $region21: #{custom_max_pool.1} parent=5 // pred_check
      _
    $region22: #{custom_max_pool.1} parent=5 // pred_check_branch
      %125 = sbr.rel (%p122) target = $region24
    $region23: #{custom_max_pool.1} parent=5 // pred_region
      %s126 = ssub.s32 %s7, 1
      %s127 = smul.u32 4, %s18
      %p128 = scmp.lt.s32.totalorder %s17, 0
      %s129 = scalar_select %p128, %s17, 0
      %p130 = scmp.lt.s32.totalorder %s19, 0
      %s131 = scalar_select %p130, %s19, 0
      %p132 = scmp.lt.s32.totalorder %s127, 7
      %s133 = scalar_select %p132, %s127, 7
      %s134 = smul.addr %s131, 8
      %s135 = sadd.s32 %s133, %s134
      %s136 = smul.addr %s129, 8
      %s137 = sadd.s32 %s135, %s136
      %s138 = smul.addr %s137, 2
      %s139 = scalar_lea.vmem %s0, %s138
      %p140 = pneg %p56
      %p141 = pneg %p53
      %p142 = pneg %p84
      %p143 = pneg %p81
      %s144 = smul.u32 4, %s18
      %p145 = scmp.lt.s32.totalorder %s17, 0
      %s146 = scalar_select %p145, %s17, 0
      %p147 = scmp.lt.s32.totalorder %s144, 7
      %s148 = scalar_select %p147, %s144, 7
      %s149 = smul.addr %s146, 8
      %s150 = sadd.s32 %s148, %s149
      %s151 = scalar_lea.vmem %s1, %s150
      %s152 = smul.u32 4, %s18
      %p153 = scmp.lt.s32.totalorder %s17, 0
      %s154 = scalar_select %p153, %s17, 0
      %p155 = scmp.lt.s32.totalorder %s19, 0
      %s156 = scalar_select %p155, %s19, 0
      %p157 = scmp.lt.s32.totalorder %s152, 7
      %s158 = scalar_select %p157, %s152, 7
      %s159 = smul.addr %s156, 8
      %s160 = sadd.s32 %s158, %s159
      %s161 = smul.addr %s154, 8
      %s162 = sadd.s32 %s160, %s161
      %s163 = smul.addr %s162, 2
      %s164 = scalar_lea.vmem %s0, %s163
      %s165 = smul.u32 4, %s18
      %s166 = smul.u32 4, %s18
      %p167 = scmp.lt.s32.totalorder %s17, 0
      %s168 = scalar_select %p167, %s17, 0
      %p169 = scmp.lt.s32.totalorder %s166, 7
      %s170 = scalar_select %p169, %s166, 7
      %s171 = smul.addr %s168, 8
      %s172 = sadd.s32 %s170, %s171
      %s173 = scalar_lea.vmem %s1, %s172
      %s174 = smul.u32 4, %s18
      %v175 = vld [vmem:[%s164] sm:$0xff]
      %177 = vst [vmem:[#allocation1] ss:$4 sm:$0xff] %v175
      %v178 = vld.sshfl [vmem:[#allocation1] sm:$0xff pattern:$0x73625140]
      %v179 = vld.sshfl [vmem:[#allocation1 + $0x8] sm:$0xff pattern:$0x73625140]
      %v180 = vld.sshfl [vmem:[#allocation1 + $0x10] sm:$0xff pattern:$0x73625140]
      %v181 = vld.sshfl [vmem:[#allocation1 + $0x18] sm:$0xff pattern:$0x73625140]
      %vm186 = vcmask 1041408
      %v187 = vsel %vm186, %v178, -inf
      %v188 = vrot.slane %v187, 4
      %v189 = vmax.f32 %v187, %v188
      %v190 = vrot.slane %v189, 2
      %v191 = vmax.f32 %v189, %v190
      %v192 = vrot.slane %v191, 1
      %v193 = vmax.f32 %v191, %v192
      %v194 = vsel %vm186, %v179, -inf
      %v195 = vrot.slane %v194, 4
      %v196 = vmax.f32 %v194, %v195
      %v197 = vrot.slane %v196, 2
      %v198 = vmax.f32 %v196, %v197
      %v199 = vrot.slane %v198, 1
      %v200 = vmax.f32 %v198, %v199
      %v201 = vsel %vm186, %v180, -inf
      %v202 = vrot.slane %v201, 4
      %v203 = vmax.f32 %v201, %v202
      %v204 = vrot.slane %v203, 2
      %v205 = vmax.f32 %v203, %v204
      %v206 = vrot.slane %v205, 1
      %v207 = vmax.f32 %v205, %v206
      %v208 = vsel %vm186, %v181, -inf
      %v209 = vrot.slane %v208, 4
      %v210 = vmax.f32 %v208, %v209
      %v211 = vrot.slane %v210, 2
      %v212 = vmax.f32 %v210, %v211
      %v213 = vrot.slane %v212, 1
      %v214 = vmax.f32 %v212, %v213
      %p215 = scmp.eq.s32.totalorder %s19, 0
      // Predicated region
      $region25: #{custom_max_pool.1} parent=23 // pred_check
        %p216 = pneg %p215
      $region26: #{custom_max_pool.1} parent=23 // pred_check_branch
        %218 = sbr.rel (%p216) target = $region28
      $region27: #{custom_max_pool.1} parent=23 // pred_region
        %v223 = vrot.slane %v200, 7
        %v224 = vrot.slane %v207, 6
        %v225 = vrot.slane %v214, 5
        %vm226 = vcmask 1040384
        %v227 = vsel %vm226, %v193, %v223
        %vm228 = vcmask 1042434
        %v229 = vsel %vm228, %v224, %v225
        %v230 = vsel %vm186, %v227, %v229
        %v232 = vlaneseq
        %vm233 = vcmp.ge.s32.totalorder %v232, 0
        %vm234 = vcmp.lt.s32.totalorder %v232, 512
        %vm235 = vmand %vm233, %vm234
        %236 = vst.msk [vmem:[%s173] sm:$0xf] %vm235, %v230
      $region28: #{custom_max_pool.1} parent=23 // pred_fallthru
        _
      %p237 = scmp.gt.s32.totalorder %s19, 0
      // Predicated region
      $region29: #{custom_max_pool.1} parent=23 // pred_check
        %p238 = pneg %p237
      $region30: #{custom_max_pool.1} parent=23 // pred_check_branch
        %240 = sbr.rel (%p238) target = $region32
      $region31: #{custom_max_pool.1} parent=23 // pred_region
        %v241 = vld [vmem:[%s173] sm:$0xf]
        %v246 = vrot.slane %v200, 7
        %v247 = vrot.slane %v207, 6
        %v248 = vrot.slane %v214, 5
        %vm249 = vcmask 1040384
        %v250 = vsel %vm249, %v193, %v246
        %vm251 = vcmask 1042434
        %v252 = vsel %vm251, %v247, %v248
        %v253 = vsel %vm186, %v250, %v252
        %v255 = vmax.f32 %v241, %v253
        %v256 = vlaneseq
        %vm257 = vcmp.ge.s32.totalorder %v256, 0
        %vm258 = vcmp.lt.s32.totalorder %v256, 512
        %vm259 = vmand %vm257, %vm258
        %260 = vst.msk [vmem:[%s173] sm:$0xf] %vm259, %v255
      $region32: #{custom_max_pool.1} parent=23 // pred_fallthru
        _
      %s261 = smul.u32 4, %s18
      %p262 = scmp.lt.s32.totalorder %s17, 0
      %s263 = scalar_select %p262, %s17, 0
      %p264 = scmp.lt.s32.totalorder %s261, 7
      %s265 = scalar_select %p264, %s261, 7
      %s266 = smul.addr %s263, 8
      %s267 = sadd.s32 %s265, %s266
      %s268 = scalar_lea.vmem %s1, %s267
      // Predicated region
      $region33: #{custom_max_pool.1} parent=23 // pred_check
        %p269 = pneg %p81
      $region34: #{custom_max_pool.1} parent=23 // pred_check_branch
        %271 = sbr.rel (%p269) target = $region36
      $region35: #{custom_max_pool.1} parent=23 // pred_region
        %s272 = smul.u32 4, %s18
      $region36: #{custom_max_pool.1} parent=23 // pred_fallthru
        _
    $region24: #{custom_max_pool.1} parent=5 // pred_fallthru
      _
    %p273 = scmp.le.s32.totalorder 2, %s7
    // Predicated region
    $region37: #{custom_max_pool.1} parent=5 // pred_check
      %p274 = pneg %p273
    $region38: #{custom_max_pool.1} parent=5 // pred_check_branch
      %276 = sbr.rel (%p274) target = $region40
    $region39: #{custom_max_pool.1} parent=5 // pred_region
      %s277 = ssub.s32 %s7, 2
      // Predicated region
      $region41: #{custom_max_pool.1} parent=39 // pred_check
        %p278 = pneg %p87
      $region42: #{custom_max_pool.1} parent=39 // pred_check_branch
        %280 = sbr.rel (%p278) target = $region44
      $region43: #{custom_max_pool.1} parent=39 // pred_region
        %s281 = smul.u32 4, %s21
        %p282 = scmp.lt.s32.totalorder %s20, 0
        %s283 = scalar_select %p282, %s20, 0
        %p284 = scmp.lt.s32.totalorder %s281, 7
        %s285 = scalar_select %p284, %s281, 7
        %s286 = smul.addr %s283, 8
        %s287 = sadd.s32 %s285, %s286
        %s288 = scalar_lea.vmem %s1, %s287
      $region44: #{custom_max_pool.1} parent=39 // pred_fallthru
        _
    $region40: #{custom_max_pool.1} parent=5 // pred_fallthru
      _
  $region6: #{custom_max_pool.1} parent=0 // loop_footer
    %s11 = sadd.s32 1, %s7
  $region7: #{custom_max_pool.1} parent=0 // loop_footer_branch
    %6 = sbr.rel target = $region3
  $region8: #{custom_max_pool.1} parent=0 // loop_exit
    _

</llo_original>
